<compile_context>
chip_gen: v7x
topology: tpu7x:2x2x1
jax: 0.10.0
libtpu: 0.0.40
codegen_flags: <defaults>
</compile_context>

<pallas_src>
import jax
import jax.numpy as jnp
from jax.experimental import pallas as pl
from jax.experimental.pallas import tpu as pltpu


def _round_up(n, m):
    return ((n + m - 1) // m) * m


def _mlp_kernel(xt_ref, w1t_ref, b1_ref, w2t_ref, b2_ref, w3_ref, b3_ref, o_ref):
    xt = xt_ref[...]                                                       # (in, tb)

    # fc1 + relu : (64, in) @ (in, tb) -> (64, tb)
    h1 = jnp.dot(w1t_ref[...], xt, preferred_element_type=jnp.float32)
    h1 = jnp.maximum(h1 + b1_ref[...].astype(jnp.float32), 0.0)

    # fc2 + relu : (32, 64) @ (64, tb) -> (32, tb)
    h2 = jnp.dot(w2t_ref[...], h1.astype(w2t_ref.dtype),
                 preferred_element_type=jnp.float32)
    h2 = jnp.maximum(h2 + b2_ref[...].astype(jnp.float32), 0.0)

    # fc3 : a (1, 32) @ (32, tb) matmul would waste the MXU (M=1); do it as a VPU
    # multiply against the (32, 1) weight column + sublane reduction (XLU, hidden
    # under the MXU work of the next grid step).
    w3_col = w3_ref[...].astype(jnp.float32)                               # (32, 1)
    out = jnp.sum(h2 * w3_col, axis=0, keepdims=True)                      # (1, tb)
    o_ref[...] = (out + b3_ref[...].astype(jnp.float32)).astype(o_ref.dtype)


def _choose_batch_tile(batch, block_b):
    """Batch tile on the lane axis: multiple of 128, and >= 2 tiles when batch allows."""
    if batch <= 128:
        return batch                       # single full-extent tile (exempt from 128 rule)
    tb = max(128, _round_up(block_b, 128))
    # Cap so the grid has at least 2 tiles -> the "parallel" axis can shard across both
    # TensorCores on v7x (no-op on v5e / v6e which have a single TC).
    tb = min(tb, _round_up(pl.cdiv(batch, 2), 128))
    return tb


def polynomial_regression_forward(x, params, *, block_b=2048, compute_dtype=None):
    """Forward pass of the 3-layer MLP (fc1 -> relu -> fc2 -> relu -> fc3).

    x: (B, input_dim) float32 (same convention as the PyTorch module).
    params: dict with w1 (in, 64), b1 (1, 64), w2 (64, 32), b2 (1, 32),
            w3 (32, 1), b3 (1, 1)   (weights stored as (in, out)).
    block_b: batch tile on the lane axis (rounded to a multiple of 128); default 2048
             amortizes per-grid-step overhead, sweep 1024-4096 on real workloads.
    compute_dtype: e.g. jnp.bfloat16 to stream x / weights in bf16 (accumulation stays
             f32) — recommended on v6e / v7x, ~1e-2-level relative error vs f32.
             None keeps everything f32.
    """
    B, input_dim = x.shape
    out_dtype = jnp.float32

    # Feature-major operands: batch on the lane axis, biases as columns.
    # x.T is one cheap wrapper pass; this kernel is MXU-issue bound, not HBM bound,
    # and the transposed layout makes the x DMA and the output store lane-dense.
    x_t = x.T                                 # (in, B)
    w1t = params["w1"].T                      # (64, in)
    w2t = params["w2"].T                      # (32, 64)
    w3c = params["w3"]                        # (32, 1) column
    b1c = params["b1"].reshape(-1, 1)         # (64, 1)
    b2c = params["b2"].reshape(-1, 1)         # (32, 1)
    b3c = params["b3"].reshape(1, 1)          # (1, 1)

    if compute_dtype is not None:
        x_t = x_t.astype(compute_dtype)
        w1t = w1t.astype(compute_dtype)
        w2t = w2t.astype(compute_dtype)
        w3c = w3c.astype(compute_dtype)
        # biases stay f32 (added after the f32-accumulated dots)

    tb = _choose_batch_tile(B, block_b)
    num_tiles = pl.cdiv(B, tb)   # boundary tile may be partial; its lanes are clipped.

    def resident(a):             # VMEM-resident weight / bias (constant index map)
        return pl.BlockSpec(a.shape, lambda i: (0, 0))

    weights = (w1t, b1c, w2t, b2c, w3c, b3c)
    weight_bytes = sum(int(a.size) * jnp.dtype(a.dtype).itemsize for a in weights)
    x_itemsize = jnp.dtype(x_t.dtype).itemsize

    cost = pl.CostEstimate(
        flops=2 * B * (input_dim * 64 + 64 * 32 + 32),
        transcendentals=0,
        bytes_accessed=B * input_dim * x_itemsize + B * 4 + weight_bytes,
    )

    # Rough per-call VMEM footprint: double-buffered x / out tiles, f32 h1/h2
    # temporaries, resident weights.  Only raise the scoped-VMEM limit when it
    # actually matters (v5e's default scoped VMEM is 16 MiB).
    vmem_est = (2 * input_dim * tb * x_itemsize + 2 * tb * 4
                + (64 + 32) * tb * 4 + weight_bytes)
    compiler_kwargs = dict(dimension_semantics=("parallel",))
    if vmem_est > 12 * 1024 * 1024:
        compiler_kwargs["vmem_limit_bytes"] = min(2 * vmem_est, 100 * 1024 * 1024)

    out = pl.pallas_call(
        _mlp_kernel,
        out_shape=jax.ShapeDtypeStruct((1, B), out_dtype),
        grid=(num_tiles,),
        in_specs=[
            pl.BlockSpec((input_dim, tb), lambda i: (0, i)),  # streamed lane-dense X^T
            resident(w1t), resident(b1c),
            resident(w2t), resident(b2c),
            resident(w3c), resident(b3c),
        ],
        out_specs=pl.BlockSpec((1, tb), lambda i: (0, i)),    # lane-dense output row
        compiler_params=pltpu.CompilerParams(**compiler_kwargs),
        cost_estimate=cost,
    )(x_t, w1t, b1c, w2t, b2c, w3c, b3c)

    return out.reshape(B, 1)


def init_params(key, input_dim):
    """Deterministic init mirroring the nn.Linear shapes (stored as (in, out))."""
    k1, k2, k3, k4, k5, k6 = jax.random.split(key, 6)

    def uniform(k, shape, fan_in):
        bound = 1.0 / jnp.sqrt(fan_in)
        return jax.random.uniform(k, shape, jnp.float32, -bound, bound)

    return {
        "w1": uniform(k1, (input_dim, 64), input_dim),
        "b1": uniform(k2, (1, 64), input_dim),
        "w2": uniform(k3, (64, 32), 64),
        "b2": uniform(k4, (1, 32), 64),
        "w3": uniform(k5, (32, 1), 32),
        "b3": uniform(k6, (1, 1), 32),
    }


def _reference(x, params):
    h = jnp.maximum(x @ params["w1"] + params["b1"], 0.0)
    h = jnp.maximum(h @ params["w2"] + params["b2"], 0.0)
    return h @ params["w3"] + params["b3"]


if __name__ == "__main__":
    key = jax.random.PRNGKey(0)
    kx, kx2, kp = jax.random.split(key, 3)

    input_dim = 16
    params = init_params(kp, input_dim)

    # Small single-tile case (f32 path), strict check.
    x = jax.random.normal(kx, (8, input_dim), jnp.float32)
    out = jax.block_until_ready(polynomial_regression_forward(x, params))
    ref = _reference(x, params)
    assert out.shape == (8, 1)
    assert jnp.allclose(out, ref, atol=1e-4), "f32 mismatch vs reference"

    # Multi-tile case with a partial boundary tile (B=300, tb=128 -> 3 tiles,
    # last tile only 44 valid lanes), f32 path.
    x2 = jax.random.normal(kx2, (300, input_dim), jnp.float32)
    out2 = jax.block_until_ready(
        polynomial_regression_forward(x2, params, block_b=128))
    ref2 = _reference(x2, params)
    assert out2.shape == (300, 1)
    assert jnp.allclose(out2, ref2, atol=1e-4), "tiled f32 mismatch vs reference"

    # bf16-streaming path (recommended on v6e / v7x), loose tolerance vs f32 reference.
    out_bf16 = jax.block_until_ready(
        polynomial_regression_forward(x2, params, block_b=128,
                                      compute_dtype=jnp.bfloat16))
    assert jnp.allclose(out_bf16, ref2, atol=1e-1, rtol=1e-1), "bf16 mismatch"

    print("KERNEL_OK")
</pallas_src>

<mosaic_0001>
module attributes {stable_mosaic.version = 11 : i64} {
  func.func @_mlp_kernel(%arg0: i32, %arg1: memref<16x8xf32, #tpu.memory_space<vmem>>, %arg2: memref<64x16xf32, #tpu.memory_space<vmem>>, %arg3: memref<64x1xf32, #tpu.memory_space<vmem>>, %arg4: memref<32x64xf32, #tpu.memory_space<vmem>>, %arg5: memref<32x1xf32, #tpu.memory_space<vmem>>, %arg6: memref<32x1xf32, #tpu.memory_space<vmem>>, %arg7: memref<1x1xf32, #tpu.memory_space<vmem>>, %arg8: memref<1x8xf32, #tpu.memory_space<vmem>>) attributes {dimension_semantics = [#tpu.dimension_semantics<parallel>], iteration_bounds = array<i64: 1>, scalar_prefetch = 0 : i64, scratch_operands = 0 : i64, tpu.core_type = #tpu.core_type<tc>, window_params = [{transform_indices = @transform_0, window_bounds = array<i64: 16, 8>}, {pipeline_mode = #tpu.pipeline_mode<synchronous>, transform_indices = @transform_1, window_bounds = array<i64: 64, 16>}, {pipeline_mode = #tpu.pipeline_mode<synchronous>, transform_indices = @transform_2, window_bounds = array<i64: 64, 1>}, {pipeline_mode = #tpu.pipeline_mode<synchronous>, transform_indices = @transform_3, window_bounds = array<i64: 32, 64>}, {pipeline_mode = #tpu.pipeline_mode<synchronous>, transform_indices = @transform_4, window_bounds = array<i64: 32, 1>}, {pipeline_mode = #tpu.pipeline_mode<synchronous>, transform_indices = @transform_5, window_bounds = array<i64: 32, 1>}, {pipeline_mode = #tpu.pipeline_mode<synchronous>, transform_indices = @transform_6, window_bounds = array<i64: 1, 1>}, {transform_indices = @transform_7, window_bounds = array<i64: 1, 8>}]} {
    %c0 = arith.constant 0 : index
    %c0_0 = arith.constant 0 : index
    %0 = vector.load %arg1[%c0, %c0_0] : memref<16x8xf32, #tpu.memory_space<vmem>>, vector<16x8xf32>
    %c0_1 = arith.constant 0 : index
    %c0_2 = arith.constant 0 : index
    %1 = vector.load %arg2[%c0_1, %c0_2] : memref<64x16xf32, #tpu.memory_space<vmem>>, vector<64x16xf32>
    %cst = arith.constant dense<0.000000e+00> : vector<64x8xf32>
    %2 = tpu.matmul %1, %0, %cst {dimension_numbers = #tpu.dot_dimension_numbers<[1], [0], [0], [1], [0, 0, 1, 1], [], []>} : vector<64x16xf32>, vector<16x8xf32>, vector<64x8xf32> -> vector<64x8xf32>
    %c0_3 = arith.constant 0 : index
    %c0_4 = arith.constant 0 : index
    %3 = vector.load %arg3[%c0_3, %c0_4] : memref<64x1xf32, #tpu.memory_space<vmem>>, vector<64x1xf32>
    %4 = vector.broadcast %3 : vector<64x1xf32> to vector<64x8xf32>
    %5 = arith.addf %2, %4 : vector<64x8xf32>
    %cst_5 = arith.constant 0.000000e+00 : f32
    %6 = vector.broadcast %cst_5 : f32 to vector<64x8xf32>
    %7 = arith.maximumf %5, %6 : vector<64x8xf32>
    %c0_6 = arith.constant 0 : index
    %c0_7 = arith.constant 0 : index
    %8 = vector.load %arg4[%c0_6, %c0_7] : memref<32x64xf32, #tpu.memory_space<vmem>>, vector<32x64xf32>
    %cst_8 = arith.constant dense<0.000000e+00> : vector<32x8xf32>
    %9 = tpu.matmul %8, %7, %cst_8 {dimension_numbers = #tpu.dot_dimension_numbers<[1], [0], [0], [1], [0, 0, 1, 1], [], []>} : vector<32x64xf32>, vector<64x8xf32>, vector<32x8xf32> -> vector<32x8xf32>
    %c0_9 = arith.constant 0 : index
    %c0_10 = arith.constant 0 : index
    %10 = vector.load %arg5[%c0_9, %c0_10] : memref<32x1xf32, #tpu.memory_space<vmem>>, vector<32x1xf32>
    %11 = vector.broadcast %10 : vector<32x1xf32> to vector<32x8xf32>
    %12 = arith.addf %9, %11 : vector<32x8xf32>
    %cst_11 = arith.constant 0.000000e+00 : f32
    %13 = vector.broadcast %cst_11 : f32 to vector<32x8xf32>
    %14 = arith.maximumf %12, %13 : vector<32x8xf32>
    %c0_12 = arith.constant 0 : index
    %c0_13 = arith.constant 0 : index
    %15 = vector.load %arg6[%c0_12, %c0_13] : memref<32x1xf32, #tpu.memory_space<vmem>>, vector<32x1xf32>
    %16 = vector.broadcast %15 : vector<32x1xf32> to vector<32x8xf32>
    %17 = arith.mulf %14, %16 : vector<32x8xf32>
    %cst_14 = arith.constant dense<0.000000e+00> : vector<8xf32>
    %18 = vector.multi_reduction <add>, %17, %cst_14 [0] : vector<32x8xf32> to vector<8xf32>
    %19 = vector.shape_cast %18 : vector<8xf32> to vector<1x8xf32>
    %c0_15 = arith.constant 0 : index
    %c0_16 = arith.constant 0 : index
    %20 = vector.load %arg7[%c0_15, %c0_16] : memref<1x1xf32, #tpu.memory_space<vmem>>, vector<1x1xf32>
    %21 = vector.broadcast %20 : vector<1x1xf32> to vector<1x8xf32>
    %22 = arith.addf %19, %21 : vector<1x8xf32>
    %c0_17 = arith.constant 0 : index
    %c0_18 = arith.constant 0 : index
    %23 = vector.load %arg8[%c0_17, %c0_18] : memref<1x8xf32, #tpu.memory_space<vmem>>, vector<1x8xf32>
    tpu.vector_store %arg8[%c0_17, %c0_18], %22 {strides = array<i32>} : memref<1x8xf32, #tpu.memory_space<vmem>>, vector<1x8xf32>,
    return
  }
  func.func @transform_0(%arg0: i32) -> (i32, i32) {
    %c0_i32 = arith.constant 0 : i32
    %c0_i32_0 = arith.constant 0 : i32
    return %c0_i32, %arg0 : i32, i32
  }
  func.func @transform_1(%arg0: i32) -> (i32, i32) {
    %c0_i32 = arith.constant 0 : i32
    %c0_i32_0 = arith.constant 0 : i32
    %c0_i32_1 = arith.constant 0 : i32
    return %c0_i32, %c0_i32_0 : i32, i32
  }
  func.func @transform_2(%arg0: i32) -> (i32, i32) {
    %c0_i32 = arith.constant 0 : i32
    %c0_i32_0 = arith.constant 0 : i32
    %c0_i32_1 = arith.constant 0 : i32
    return %c0_i32, %c0_i32_0 : i32, i32
  }
  func.func @transform_3(%arg0: i32) -> (i32, i32) {
    %c0_i32 = arith.constant 0 : i32
    %c0_i32_0 = arith.constant 0 : i32
    %c0_i32_1 = arith.constant 0 : i32
    return %c0_i32, %c0_i32_0 : i32, i32
  }
  func.func @transform_4(%arg0: i32) -> (i32, i32) {
    %c0_i32 = arith.constant 0 : i32
    %c0_i32_0 = arith.constant 0 : i32
    %c0_i32_1 = arith.constant 0 : i32
    return %c0_i32, %c0_i32_0 : i32, i32
  }
  func.func @transform_5(%arg0: i32) -> (i32, i32) {
    %c0_i32 = arith.constant 0 : i32
    %c0_i32_0 = arith.constant 0 : i32
    %c0_i32_1 = arith.constant 0 : i32
    return %c0_i32, %c0_i32_0 : i32, i32
  }
  func.func @transform_6(%arg0: i32) -> (i32, i32) {
    %c0_i32 = arith.constant 0 : i32
    %c0_i32_0 = arith.constant 0 : i32
    %c0_i32_1 = arith.constant 0 : i32
    return %c0_i32, %c0_i32_0 : i32, i32
  }
  func.func @transform_7(%arg0: i32) -> (i32, i32) {
    %c0_i32 = arith.constant 0 : i32
    %c0_i32_0 = arith.constant 0 : i32
    return %c0_i32, %arg0 : i32, i32
  }
}

</mosaic_0001>

<llo_original>
// kernel: tpu_custom_call.1
$region0: #{tpu_custom_call.1}
  #allocation0 [shape = 'u32[]', space=smem, size = 0x4, offset = 0x4, fixed_abs, tag = 'smem constant byte address 0x4 - core index']
  #allocation1 [shape = 'u32[144,128]{1,0:T(1,128)}', space=vmem, size = 0x12000, scoped, tag = 'internal scratch']
  #allocation2 [shape = 'f32[1,1]{1,0:T(1,128)S(1)}', space=vmem, size = 0x200, scoped, tag = 'scoped memory for tpu_custom_call.1']
  %s0 = inlined_call_operand.vmem [shape: f32[16,8], index: 0, kind: input, shape index: {}]
  %s1 = inlined_call_operand.vmem [shape: f32[64,16], index: 1, kind: input, shape index: {}]
  %s2 = inlined_call_operand.vmem [shape: f32[64,1], index: 2, kind: input, shape index: {}]
  %s3 = inlined_call_operand.vmem [shape: f32[32,64], index: 3, kind: input, shape index: {}]
  %s4 = inlined_call_operand.vmem [shape: f32[32,1], index: 4, kind: input, shape index: {}]
  %s5 = inlined_call_operand.vmem [shape: f32[32,1], index: 5, kind: input, shape index: {}]
  %s6 = inlined_call_operand.<no memory space> [shape: f32[1,1], index: 6, kind: input, shape index: {}]
  %s7 = inlined_call_operand.hbm [shape: f32[1,8], index: 7, kind: output, shape index: {}]
  %s8 = sld [smem:[#allocation0]]
  $region38: #{tpu_custom_call.1} parent=0
    _
  %s10 = ssub.s32 1, %s8
  %s11 = scalar_select 0, %s10, %s8
  %v12 = vstv %s6
  %13 = vst [vmem:[#allocation2] sm:$0x1] %v12
  $region1: #{tpu_custom_call.1} parent=0
    #allocation3 [shape = 'u8[512]{0}', space=vmem, size = 0x400, scoped, tag = 'output window, operand 0, single buffered']
    #allocation4 [shape = 's32[1]{0}', space=sflag, size = 0x4, scoped, tag = 'scoped memory for tpu_custom_call.1']
    %14 = vsyncpa [#allocation4], 0
    // Predicated region
    $region2: #{tpu_custom_call.1} parent=1 // pred_check
      _
    $region3: #{tpu_custom_call.1} parent=1 // pred_check_branch
      %16 = sbr.rel (0) target = $region5
    $region4: #{tpu_custom_call.1} parent=1 // pred_region
      _
    $region5: #{tpu_custom_call.1} parent=1 // pred_fallthru
      _
    // Predicated region
    $region6: #{tpu_custom_call.1} parent=1 // pred_check
      _
    $region7: #{tpu_custom_call.1} parent=1 // pred_check_branch
      %18 = sbr.rel (0) target = $region9
    $region8: #{tpu_custom_call.1} parent=1 // pred_region
      _
    $region9: #{tpu_custom_call.1} parent=1 // pred_fallthru
      _
    // Predicated region
    $region10: #{tpu_custom_call.1} parent=1 // pred_check
      _
    $region11: #{tpu_custom_call.1} parent=1 // pred_check_branch
      %20 = sbr.rel (0) target = $region13
    $region12: #{tpu_custom_call.1} parent=1 // pred_region
      _
    $region13: #{tpu_custom_call.1} parent=1 // pred_fallthru
      _
    // Predicated region
    $region14: #{tpu_custom_call.1} parent=1 // pred_check
      _
    $region15: #{tpu_custom_call.1} parent=1 // pred_check_branch
      %22 = sbr.rel (0) target = $region17
    $region16: #{tpu_custom_call.1} parent=1 // pred_region
      _
    $region17: #{tpu_custom_call.1} parent=1 // pred_fallthru
      _
    // Predicated region
    $region18: #{tpu_custom_call.1} parent=1 // pred_check
      _
    $region19: #{tpu_custom_call.1} parent=1 // pred_check_branch
      %24 = sbr.rel (0) target = $region21
    $region20: #{tpu_custom_call.1} parent=1 // pred_region
      _
    $region21: #{tpu_custom_call.1} parent=1 // pred_fallthru
      _
    // Predicated region
    $region22: #{tpu_custom_call.1} parent=1 // pred_check
      _
    $region23: #{tpu_custom_call.1} parent=1 // pred_check_branch
      %26 = sbr.rel (0) target = $region25
    $region24: #{tpu_custom_call.1} parent=1 // pred_region
      _
    $region25: #{tpu_custom_call.1} parent=1 // pred_fallthru
      _
    // Predicated region
    $region26: #{tpu_custom_call.1} parent=1 // pred_check
      _
    $region27: #{tpu_custom_call.1} parent=1 // pred_check_branch
      %28 = sbr.rel (0) target = $region29
    $region28: #{tpu_custom_call.1} parent=1 // pred_region
      _
    $region29: #{tpu_custom_call.1} parent=1 // pred_fallthru
      _
    %v29 = vld [vmem:[%s0] sm:$0xff]
    %v30 = vld [vmem:[%s0 + $0x8] sm:$0xff]
    %v31 = vld [vmem:[%s1] sm:$0xff]
    %v32 = vld [vmem:[%s1 + $0x8] sm:$0xff]
    %v33 = vld [vmem:[%s1 + $0x10] sm:$0xff]
    %v34 = vld [vmem:[%s1 + $0x18] sm:$0xff]
    %v35 = vld [vmem:[%s1 + $0x20] sm:$0xff]
    %v36 = vld [vmem:[%s1 + $0x28] sm:$0xff]
    %v37 = vld [vmem:[%s1 + $0x30] sm:$0xff]
    %v38 = vld [vmem:[%s1 + $0x38] sm:$0xff]
    %v39 = vld [vmem:[%s2] sm:$0xff]
    %v40 = vld [vmem:[%s2 + $0x8] sm:$0xff]
    %v41 = vld [vmem:[%s2 + $0x10] sm:$0xff]
    %v42 = vld [vmem:[%s2 + $0x18] sm:$0xff]
    %v43 = vld [vmem:[%s2 + $0x20] sm:$0xff]
    %v44 = vld [vmem:[%s2 + $0x28] sm:$0xff]
    %v45 = vld [vmem:[%s2 + $0x30] sm:$0xff]
    %v46 = vld [vmem:[%s2 + $0x38] sm:$0xff]
    %48 = vset.pattern.permute.xlu0 0
    %49 = vperm.xlu0 %48, %v39
    %v50 = vpop.permute.xlu0 %49
    %53 = vset.pattern.permute.xlu0 0
    %54 = vperm.xlu0 %53, %v40
    %v55 = vpop.permute.xlu0 %54
    %58 = vset.pattern.permute.xlu0 0
    %59 = vperm.xlu0 %58, %v41
    %v60 = vpop.permute.xlu0 %59
    %63 = vset.pattern.permute.xlu0 0
    %64 = vperm.xlu0 %63, %v42
    %v65 = vpop.permute.xlu0 %64
    %68 = vset.pattern.permute.xlu0 0
    %69 = vperm.xlu0 %68, %v43
    %v70 = vpop.permute.xlu0 %69
    %73 = vset.pattern.permute.xlu0 0
    %74 = vperm.xlu0 %73, %v44
    %v75 = vpop.permute.xlu0 %74
    %78 = vset.pattern.permute.xlu0 0
    %79 = vperm.xlu0 %78, %v45
    %v80 = vpop.permute.xlu0 %79
    %83 = vset.pattern.permute.xlu0 0
    %84 = vperm.xlu0 %83, %v46
    %v85 = vpop.permute.xlu0 %84
    %vm87 = vcmask 130048
    %v89 = vsel %vm87, %v31, 0
    %v92 = vsel %vm87, %v32, 0
    %v95 = vsel %vm87, %v33, 0
    %v98 = vsel %vm87, %v34, 0
    %v101 = vsel %vm87, %v35, 0
    %v104 = vsel %vm87, %v36, 0
    %v107 = vsel %vm87, %v37, 0
    %v110 = vsel %vm87, %v38, 0
    %112 = vmatprep.subr.mxu0 0.0
    %113 = vmatpush1.msra.mxu0 %v29
    %114 = vmatprep.subr.mxu0 0.0
    %115 = vmatpush1.msra.mxu0 %v30
    %116 = vmatprep.subr.mxu0 0.0
    %117 = vmatpush1.msra.mxu0 0.0
    %118 = vmatprep.subr.mxu0 0.0
    %119 = vmatpush1.msra.mxu0 0.0
    %120 = vmatprep.subr.mxu0 0.0
    %121 = vmatpush1.msra.mxu0 0.0
    %122 = vmatprep.subr.mxu0 0.0
    %123 = vmatpush1.msra.mxu0 0.0
    %124 = vmatprep.subr.mxu0 0.0
    %125 = vmatpush1.msra.mxu0 0.0
    %126 = vmatprep.subr.mxu0 0.0
    %127 = vmatpush1.msra.mxu0 0.0
    %128 = vmatprep.subr.mxu0 0.0
    %129 = vmatpush1.msra.mxu0 0.0
    %130 = vmatprep.subr.mxu0 0.0
    %131 = vmatpush1.msra.mxu0 0.0
    %132 = vmatprep.subr.mxu0 0.0
    %133 = vmatpush1.msra.mxu0 0.0
    %134 = vmatprep.subr.mxu0 0.0
    %135 = vmatpush1.msra.mxu0 0.0
    %136 = vmatprep.subr.mxu0 0.0
    %137 = vmatpush1.msra.mxu0 0.0
    %138 = vmatprep.subr.mxu0 0.0
    %139 = vmatpush1.msra.mxu0 0.0
    %140 = vmatprep.subr.mxu0 0.0
    %141 = vmatpush1.msra.mxu0 0.0
    %142 = vmatprep.subr.mxu0 0.0
    %143 = vmatpush1.msra.mxu0 0.0
    %144 = vmatprep.subr.mxu0 0.0
    %145 = vmatpush1.msra.mxu0 0.0
    %146 = vmatprep.subr.mxu0 0.0
    %147 = vmatpush1.msra.mxu0 0.0
    %148 = vmatprep.subr.mxu0 0.0
    %149 = vmatpush1.msra.mxu0 0.0
    %150 = vmatprep.subr.mxu0 0.0
    %151 = vmatpush1.msra.mxu0 0.0
    %152 = vmatprep.subr.mxu0 0.0
    %153 = vmatpush1.msra.mxu0 0.0
    %154 = vmatprep.subr.mxu0 0.0
    %155 = vmatpush1.msra.mxu0 0.0
    %156 = vmatprep.subr.mxu0 0.0
    %157 = vmatpush1.msra.mxu0 0.0
    %158 = vmatprep.subr.mxu0 0.0
    %159 = vmatpush1.msra.mxu0 0.0
    %160 = vmatprep.subr.mxu0 0.0
    %161 = vmatpush1.msra.mxu0 0.0
    %162 = vmatprep.subr.mxu0 0.0
    %163 = vmatpush1.msra.mxu0 0.0
    %164 = vmatprep.subr.mxu0 0.0
    %165 = vmatpush1.msra.mxu0 0.0
    %166 = vmatprep.subr.mxu0 0.0
    %167 = vmatpush1.msra.mxu0 0.0
    %168 = vmatprep.subr.mxu0 0.0
    %169 = vmatpush1.msra.mxu0 0.0
    %170 = vmatprep.subr.mxu0 0.0
    %171 = vmatpush1.msra.mxu0 0.0
    %172 = vmatprep.subr.mxu0 0.0
    %173 = vmatpush1.msra.mxu0 0.0
    %174 = vmatprep.subr.mxu0 0.0
    %175 = vmatpush1.msra.mxu0 0.0
    %176 = vmatprep.mubr.f32.mxu0 0.0
    %177 = vmatmul.mubr.f32.gmra.mrb[0].mxu0 %v89
    %v178 = vpop.f32.mrb[0].mxu0
    %v179 = vadd.f32 %v50, %v178
    %v180 = vpop.f32.mrb[0].mxu0
    %181 = vmatprep.mubr.f32.mxu0 0.0
    %182 = vmatmul.mubr.f32.gmra.mrb[0].mxu0 %v92
    %v183 = vpop.f32.mrb[0].mxu0
    %v184 = vadd.f32 %v55, %v183
    %v185 = vpop.f32.mrb[0].mxu0
    %186 = vmatprep.mubr.f32.mxu0 0.0
    %187 = vmatmul.mubr.f32.gmra.mrb[0].mxu0 %v95
    %v188 = vpop.f32.mrb[0].mxu0
    %v189 = vadd.f32 %v60, %v188
    %v190 = vpop.f32.mrb[0].mxu0
    %191 = vmatprep.mubr.f32.mxu0 0.0
    %192 = vmatmul.mubr.f32.gmra.mrb[0].mxu0 %v98
    %v193 = vpop.f32.mrb[0].mxu0
    %v194 = vadd.f32 %v65, %v193
    %v195 = vpop.f32.mrb[0].mxu0
    %196 = vmatprep.mubr.f32.mxu0 0.0
    %197 = vmatmul.mubr.f32.gmra.mrb[0].mxu0 %v101
    %v198 = vpop.f32.mrb[0].mxu0
    %v199 = vadd.f32 %v70, %v198
    %v200 = vpop.f32.mrb[0].mxu0
    %201 = vmatprep.mubr.f32.mxu0 0.0
    %202 = vmatmul.mubr.f32.gmra.mrb[0].mxu0 %v104
    %v203 = vpop.f32.mrb[0].mxu0
    %v204 = vadd.f32 %v75, %v203
    %v205 = vpop.f32.mrb[0].mxu0
    %206 = vmatprep.mubr.f32.mxu0 0.0
    %207 = vmatmul.mubr.f32.gmra.mrb[0].mxu0 %v107
    %v208 = vpop.f32.mrb[0].mxu0
    %v209 = vadd.f32 %v80, %v208
    %v210 = vpop.f32.mrb[0].mxu0
    %211 = vmatprep.mubr.f32.mxu0 0.0
    %212 = vmatmul.mubr.f32.gmra.mrb[0].mxu0 %v110
    %v213 = vpop.f32.mrb[0].mxu0
    %v214 = vadd.f32 %v85, %v213
    %v215 = vpop.f32.mrb[0].mxu0
    %216 = vdwg.mxu0
    %v217 = vmax.f32 %v179, 0.0
    %v218 = vmax.f32 %v184, 0.0
    %v219 = vmax.f32 %v189, 0.0
    %v220 = vmax.f32 %v194, 0.0
    %v221 = vmax.f32 %v199, 0.0
    %v222 = vmax.f32 %v204, 0.0
    %v223 = vmax.f32 %v209, 0.0
    %v224 = vmax.f32 %v214, 0.0
    %v225 = vld [vmem:[%s3] sm:$0xff]
    %v226 = vld [vmem:[%s3 + $0x8] sm:$0xff]
    %v227 = vld [vmem:[%s3 + $0x10] sm:$0xff]
    %v228 = vld [vmem:[%s3 + $0x18] sm:$0xff]
    %v229 = vld [vmem:[%s4] sm:$0xff]
    %v230 = vld [vmem:[%s4 + $0x8] sm:$0xff]
    %v231 = vld [vmem:[%s4 + $0x10] sm:$0xff]
    %v232 = vld [vmem:[%s4 + $0x18] sm:$0xff]
    %234 = vset.pattern.permute.xlu0 0
    %235 = vperm.xlu0 %234, %v229
    %v236 = vpop.permute.xlu0 %235
    %239 = vset.pattern.permute.xlu0 0
    %240 = vperm.xlu0 %239, %v230
    %v241 = vpop.permute.xlu0 %240
    %244 = vset.pattern.permute.xlu0 0
    %245 = vperm.xlu0 %244, %v231
    %v246 = vpop.permute.xlu0 %245
    %249 = vset.pattern.permute.xlu0 0
    %250 = vperm.xlu0 %249, %v232
    %v251 = vpop.permute.xlu0 %250
    %vm253 = vcmask 523264
    %v255 = vsel %vm253, %v225, 0
    %v258 = vsel %vm253, %v226, 0
    %v261 = vsel %vm253, %v227, 0
    %v264 = vsel %vm253, %v228, 0
    %266 = vmatprep.subr.mxu0 0.0
    %267 = vmatpush1.msra.mxu0 %v217
    %268 = vmatprep.subr.mxu0 0.0
    %269 = vmatpush1.msra.mxu0 %v218
    %270 = vmatprep.subr.mxu0 0.0
    %271 = vmatpush1.msra.mxu0 %v219
    %272 = vmatprep.subr.mxu0 0.0
    %273 = vmatpush1.msra.mxu0 %v220
    %274 = vmatprep.subr.mxu0 0.0
    %275 = vmatpush1.msra.mxu0 %v221
    %276 = vmatprep.subr.mxu0 0.0
    %277 = vmatpush1.msra.mxu0 %v222
    %278 = vmatprep.subr.mxu0 0.0
    %279 = vmatpush1.msra.mxu0 %v223
    %280 = vmatprep.subr.mxu0 0.0
    %281 = vmatpush1.msra.mxu0 %v224
    %282 = vmatprep.subr.mxu0 0.0
    %283 = vmatpush1.msra.mxu0 0.0
    %284 = vmatprep.subr.mxu0 0.0
    %285 = vmatpush1.msra.mxu0 0.0
    %286 = vmatprep.subr.mxu0 0.0
    %287 = vmatpush1.msra.mxu0 0.0
    %288 = vmatprep.subr.mxu0 0.0
    %289 = vmatpush1.msra.mxu0 0.0
    %290 = vmatprep.subr.mxu0 0.0
    %291 = vmatpush1.msra.mxu0 0.0
    %292 = vmatprep.subr.mxu0 0.0
    %293 = vmatpush1.msra.mxu0 0.0
    %294 = vmatprep.subr.mxu0 0.0
    %295 = vmatpush1.msra.mxu0 0.0
    %296 = vmatprep.subr.mxu0 0.0
    %297 = vmatpush1.msra.mxu0 0.0
    %298 = vmatprep.subr.mxu0 0.0
    %299 = vmatpush1.msra.mxu0 0.0
    %300 = vmatprep.subr.mxu0 0.0
    %301 = vmatpush1.msra.mxu0 0.0
    %302 = vmatprep.subr.mxu0 0.0
    %303 = vmatpush1.msra.mxu0 0.0
    %304 = vmatprep.subr.mxu0 0.0
    %305 = vmatpush1.msra.mxu0 0.0
    %306 = vmatprep.subr.mxu0 0.0
    %307 = vmatpush1.msra.mxu0 0.0
    %308 = vmatprep.subr.mxu0 0.0
    %309 = vmatpush1.msra.mxu0 0.0
    %310 = vmatprep.subr.mxu0 0.0
    %311 = vmatpush1.msra.mxu0 0.0
    %312 = vmatprep.subr.mxu0 0.0
    %313 = vmatpush1.msra.mxu0 0.0
    %314 = vmatprep.subr.mxu0 0.0
    %315 = vmatpush1.msra.mxu0 0.0
    %316 = vmatprep.subr.mxu0 0.0
    %317 = vmatpush1.msra.mxu0 0.0
    %318 = vmatprep.subr.mxu0 0.0
    %319 = vmatpush1.msra.mxu0 0.0
    %320 = vmatprep.subr.mxu0 0.0
    %321 = vmatpush1.msra.mxu0 0.0
    %322 = vmatprep.subr.mxu0 0.0
    %323 = vmatpush1.msra.mxu0 0.0
    %324 = vmatprep.subr.mxu0 0.0
    %325 = vmatpush1.msra.mxu0 0.0
    %326 = vmatprep.subr.mxu0 0.0
    %327 = vmatpush1.msra.mxu0 0.0
    %328 = vmatprep.subr.mxu0 0.0
    %329 = vmatpush1.msra.mxu0 0.0
    %330 = vmatprep.mubr.f32.mxu0 0.0
    %331 = vmatmul.mubr.f32.gmra.mrb[0].mxu0 %v255
    %v332 = vpop.f32.mrb[0].mxu0
    %v333 = vadd.f32 %v236, %v332
    %v334 = vpop.f32.mrb[0].mxu0
    %335 = vmatprep.mubr.f32.mxu0 0.0
    %336 = vmatmul.mubr.f32.gmra.mrb[0].mxu0 %v258
    %v337 = vpop.f32.mrb[0].mxu0
    %v338 = vadd.f32 %v241, %v337
    %v339 = vpop.f32.mrb[0].mxu0
    %340 = vmatprep.mubr.f32.mxu0 0.0
    %341 = vmatmul.mubr.f32.gmra.mrb[0].mxu0 %v261
    %v342 = vpop.f32.mrb[0].mxu0
    %v343 = vadd.f32 %v246, %v342
    %v344 = vpop.f32.mrb[0].mxu0
    %345 = vmatprep.mubr.f32.mxu0 0.0
    %346 = vmatmul.mubr.f32.gmra.mrb[0].mxu0 %v264
    %v347 = vpop.f32.mrb[0].mxu0
    %v348 = vadd.f32 %v251, %v347
    %v349 = vpop.f32.mrb[0].mxu0
    %350 = vdwg.mxu0
    %v351 = vmax.f32 %v333, 0.0
    %v352 = vmax.f32 %v338, 0.0
    %v353 = vmax.f32 %v343, 0.0
    %v354 = vmax.f32 %v348, 0.0
    %v355 = vld [vmem:[%s5] sm:$0xff]
    %v356 = vld [vmem:[%s5 + $0x8] sm:$0xff]
    %v357 = vld [vmem:[%s5 + $0x10] sm:$0xff]
    %v358 = vld [vmem:[%s5 + $0x18] sm:$0xff]
    %360 = vset.pattern.permute.xlu0 0
    %361 = vperm.xlu0 %360, %v355
    %v362 = vpop.permute.xlu0 %361
    %365 = vset.pattern.permute.xlu0 0
    %366 = vperm.xlu0 %365, %v356
    %v367 = vpop.permute.xlu0 %366
    %370 = vset.pattern.permute.xlu0 0
    %371 = vperm.xlu0 %370, %v357
    %v372 = vpop.permute.xlu0 %371
    %375 = vset.pattern.permute.xlu0 0
    %376 = vperm.xlu0 %375, %v358
    %v377 = vpop.permute.xlu0 %376
    %v379 = vmul.f32 %v351, %v362
    %v380 = vmul.f32 %v352, %v367
    %v381 = vmul.f32 %v353, %v372
    %v382 = vmul.f32 %v354, %v377
    %vm383 = vcmask 64512
    %v384 = vsel %vm383, %v379, 0.0
    %v385 = vsel %vm383, %v380, 0.0
    %v386 = vadd.f32 %v384, %v385
    %v387 = vsel %vm383, %v381, 0.0
    %v388 = vadd.f32 %v386, %v387
    %v389 = vsel %vm383, %v382, 0.0
    %v390 = vadd.f32 %v388, %v389
    %v391 = vrot.slane %v390, 4
    %v392 = vadd.f32 %v390, %v391
    %v393 = vrot.slane %v392, 2
    %v394 = vadd.f32 %v392, %v393
    %v395 = vrot.slane %v394, 1
    %v396 = vadd.f32 %v394, %v395
    %v397 = vld [vmem:[#allocation2] sm:$0x1]
    %399 = vset.pattern.permute.xlu0 0
    %400 = vperm.xlu0 %399, %v397
    %v401 = vpop.permute.xlu0 %400
    %v403 = vlaneseq
    %v404 = vshrl.u32 %v403, 7
    %v405 = vsub.s32 0, %v404
    %v406 = vrot.slane %v401, %v405
    %v407 = vadd.f32 %v396, %v406
    %vm408 = vcmask 57344
    %409 = vst.msk [vmem:[#allocation3] sm:$0x1] %vm408, %v407
    // Predicated region
    $region30: #{tpu_custom_call.1} parent=1 // pred_check
      _
    $region31: #{tpu_custom_call.1} parent=1 // pred_check_branch
      %411 = sbr.rel (0) target = $region33
    $region32: #{tpu_custom_call.1} parent=1 // pred_region
      %s413 = ssub.s32 16, 16
      %414 = vsyncadd [#allocation4], %s413
      %s416 = sshll.u32 [#allocation3], 4
      %s417 = int_to_ptr.vmem [resolvable:$true] %s416
      %419 = dma.vmem_to_hbm [thread:$0]  %s417, 16, %s7, [#allocation4]
    $region33: #{tpu_custom_call.1} parent=1 // pred_fallthru
      _
    // Predicated region
    $region34: #{tpu_custom_call.1} parent=1 // pred_check
      _
    $region35: #{tpu_custom_call.1} parent=1 // pred_check_branch
      %421 = sbr.rel (0) target = $region37
    $region36: #{tpu_custom_call.1} parent=1 // pred_region
      %422 = dma.done [#allocation4], 16
    $region37: #{tpu_custom_call.1} parent=1 // pred_fallthru
      _
    %423 = vsyncpa [#allocation4], 1

</llo_original>
